<compile_context>
chip_gen: v7x
topology: tpu7x:2x2x1
jax: 0.10.0
libtpu: 0.0.40
codegen_flags: <defaults>
</compile_context>

<pallas_src>
import functools

import jax
import jax.numpy as jnp
from jax.experimental import pallas as pl
from jax.experimental.pallas import tpu as pltpu


# ------------------------------ HW-derived budgets -------------------------- #

def _vmem_phys_bytes():
    try:
        info = pltpu.get_tpu_info()
        return int(getattr(info, "vmem_capacity_bytes", 64 * 1024 * 1024))
    except Exception:
        return 64 * 1024 * 1024          # conservative: v7x per-core VMEM


_VMEM_PHYS = _vmem_phys_bytes()
# per-call scoped-VMEM ceiling: safe on v7x (64 MiB physical) and below defaults' risk
_VMEM_CAP = min(_VMEM_PHYS * 3 // 4, 48 * 1024 * 1024)
# budget for the double-buffered, row-tiled blocks of the projection calls
_ROW_BLOCK_BUDGET = min(_VMEM_PHYS // 6, 16 * 1024 * 1024)
# budget for one attention grid step (inputs + outputs + temporaries, double-buffered)
_ATTN_STEP_BUDGET = min(_VMEM_PHYS // 3, 24 * 1024 * 1024)


def _mk_params(semantics, est_step_bytes):
    limit = int(min(max(2 * est_step_bytes, 32 * 1024 * 1024), _VMEM_CAP))
    return pltpu.CompilerParams(dimension_semantics=semantics,
                                vmem_limit_bytes=limit)


def _pick_tile_m(m, per_row_bytes, budget_bytes):
    """Largest row tile that divides m (t == m allowed) whose double-buffered row
    blocks fit the budget.  Prefers 256/512-aligned tiles for the 256x256 MXU."""
    for t in (1024, 512, 256, 128, 64, 32, 16, 8):
        if t <= m and m % t == 0 and 2 * t * per_row_bytes <= budget_bytes:
            return t
    # TODO(synk): pad awkward M to a multiple of 8 instead of whole-array fallback.
    return m


# ----------------------------- Pallas kernels ------------------------------ #

def _qkv_proj_kernel(xq_ref, xk_ref, xv_ref,
                     wq_ref, bq_ref, wk_ref, bk_ref, wv_ref, bv_ref,
                     qp_ref, kp_ref, vp_ref):
    # One M-tile per grid step; three projections fused so the activation tiles
    # are loaded once.  bf16 MXU inputs, f32 accumulation, bf16 intermediates out.
    def proj(x_ref, w_ref, b_ref, o_ref):
        x = x_ref[...].astype(jnp.bfloat16)
        w = w_ref[...].astype(jnp.bfloat16)
        acc = jnp.dot(x, w, preferred_element_type=jnp.float32) + b_ref[...]
        o_ref[...] = acc.astype(o_ref.dtype)

    proj(xq_ref, wq_ref, bq_ref, qp_ref)
    proj(xk_ref, wk_ref, bk_ref, kp_ref)
    proj(xv_ref, wv_ref, bv_ref, vp_ref)


def _attention_kernel(q_ref, k_ref, v_ref, ctx_ref, attn_ref, *, scale):
    # Block = (bb*H, tq, dph) queries against the full (bb*H, L, dph) K/V of the
    # same batch group.  Scale folded into q (cheaper than scaling [.., tq, L]);
    # contraction on k's last dim directly (no explicit transpose); softmax in f32
    # with an EUP reciprocal.
    q = q_ref[...] * scale                                    # stays bf16 (weak scalar)
    s = jnp.einsum("hqd,hkd->hqk", q, k_ref[...],
                   preferred_element_type=jnp.float32)        # [bb*H, tq, L] f32
    m = jnp.max(s, axis=-1, keepdims=True)
    e = jnp.exp(s - m)
    denom = jnp.sum(e, axis=-1, keepdims=True)
    attn = e * pl.reciprocal(denom)                           # exact (approx loosens parity)
    attn_ref[...] = attn                                      # returned value: keep f32
    ctx = jnp.einsum("hqk,hkd->hqd", attn.astype(v_ref.dtype), v_ref[...],
                     preferred_element_type=jnp.float32)
    ctx_ref[...] = ctx.astype(ctx_ref.dtype)                  # bf16 intermediate


def _final_kernel(ctx_ref, res_ref, wf_ref, bf_ref, g_ref, beta_ref, o_ref, *, eps):
    # final linear (bf16 MXU) + residual add + LayerNorm (f32), one M-tile per step.
    ctx = ctx_ref[...]                                        # already bf16
    w = wf_ref[...].astype(jnp.bfloat16)
    out = jnp.dot(ctx, w, preferred_element_type=jnp.float32) + bf_ref[...]
    y = res_ref[...] + out
    mean = jnp.mean(y, axis=-1, keepdims=True)
    var = jnp.mean((y - mean) ** 2, axis=-1, keepdims=True)   # biased, like torch LN
    o_ref[...] = (y - mean) * jax.lax.rsqrt(var + eps) * g_ref[...] + beta_ref[...]


# ------------------------------ wrappers ----------------------------------- #

def _qkv_proj(xq, xk, xv, wq, bq, wk, bk, wv, bv):
    M, D = xq.shape
    per_row = 3 * D * 4 + 3 * D * 2          # 3 f32 inputs + 3 bf16 outputs per row
    tm = _pick_tile_m(M, per_row, _ROW_BLOCK_BUDGET)
    row_in = pl.BlockSpec((tm, D), lambda i: (i, 0))
    row_out = pl.BlockSpec((tm, D), lambda i: (i, 0))
    w_spec = pl.BlockSpec((D, D), lambda i: (0, 0))   # constant index -> DMA'd once
    b_spec = pl.BlockSpec((1, D), lambda i: (0, 0))
    est = 2 * (tm * per_row) + 2 * 3 * (D * D * 4 + D * 4)
    cost = pl.CostEstimate(
        flops=int(6 * M * D * D),
        transcendentals=0,
        bytes_accessed=int(4 * (3 * M * D + 3 * D * D + 3 * D) + 2 * 3 * M * D),
    )
    return pl.pallas_call(
        _qkv_proj_kernel,
        out_shape=tuple(jax.ShapeDtypeStruct((M, D), jnp.bfloat16) for _ in range(3)),
        grid=(M // tm,),
        in_specs=[row_in, row_in, row_in,
                  w_spec, b_spec, w_spec, b_spec, w_spec, b_spec],
        out_specs=(row_out, row_out, row_out),
        compiler_params=_mk_params(("parallel",), est),
        cost_estimate=cost,
    )(xq, xk, xv, wq, bq, wk, bk, wv, bv)


def _attention(qh, kh, vh, scale, num_heads):
    BH, L, dph = qh.shape
    H = num_heads
    B = BH // H

    # query-row tile: full L for short sequences, 128/256-aligned tile otherwise
    tq = L
    for cand in (256, 128):
        if cand < L and L % cand == 0:
            tq = cand
            break

    def step_bytes(bb):
        qb = bb * H * tq * dph * 2                 # q block, bf16
        kvb = 2 * bb * H * L * dph * 2             # K/V blocks (resident across tq axis)
        att = bb * H * tq * L * 4                  # attn out block, f32
        ctx = bb * H * tq * dph * 2                # ctx out block, bf16
        tmp = 2 * bb * H * tq * L * 4              # scores + exp temporaries
        return 2 * (qb + kvb + att + ctx) + tmp    # x2 ~= double buffering

    bb = 1
    for cand in range(B, 0, -1):                   # largest batch group within budget
        if B % cand == 0 and step_bytes(cand) <= _ATTN_STEP_BUDGET:
            bb = cand
            break

    q_spec = pl.BlockSpec((bb * H, tq, dph), lambda b, t: (b, t, 0))
    kv_spec = pl.BlockSpec((bb * H, L, dph), lambda b, t: (b, 0, 0))
    ctx_spec = pl.BlockSpec((bb * H, tq, dph), lambda b, t: (b, t, 0))
    attn_spec = pl.BlockSpec((bb * H, tq, L), lambda b, t: (b, t, 0))

    cost = pl.CostEstimate(
        flops=int(4 * BH * L * L * dph + 5 * BH * L * L),
        transcendentals=int(BH * L * L + BH * L),
        bytes_accessed=int(2 * 4 * BH * L * dph + 4 * BH * L * L),
    )
    kernel = functools.partial(_attention_kernel, scale=scale)
    return pl.pallas_call(
        kernel,
        out_shape=(
            jax.ShapeDtypeStruct((BH, L, dph), jnp.bfloat16),
            jax.ShapeDtypeStruct((BH, L, L), jnp.float32),
        ),
        grid=(B // bb, L // tq),
        in_specs=[q_spec, kv_spec, kv_spec],
        out_specs=(ctx_spec, attn_spec),
        compiler_params=_mk_params(("parallel", "parallel"), step_bytes(bb)),
        cost_estimate=cost,
    )(qh, kh, vh)


def _final(ctx, residual, wf, bf, gamma, beta, eps=1e-5):
    M, D = ctx.shape
    per_row = D * 2 + D * 4 + D * 4            # bf16 ctx + f32 residual + f32 out per row
    tm = _pick_tile_m(M, per_row, _ROW_BLOCK_BUDGET)
    ctx_spec = pl.BlockSpec((tm, D), lambda i: (i, 0))
    res_spec = pl.BlockSpec((tm, D), lambda i: (i, 0))
    out_spec = pl.BlockSpec((tm, D), lambda i: (i, 0))
    w_spec = pl.BlockSpec((D, D), lambda i: (0, 0))
    b_spec = pl.BlockSpec((1, D), lambda i: (0, 0))
    est = 2 * (tm * per_row) + 2 * (D * D * 4 + 3 * D * 4)
    cost = pl.CostEstimate(
        flops=int(2 * M * D * D + 10 * M * D),
        transcendentals=int(M),
        bytes_accessed=int(2 * M * D + 4 * (2 * M * D + D * D + 3 * D)),
    )
    kernel = functools.partial(_final_kernel, eps=eps)
    return pl.pallas_call(
        kernel,
        out_shape=jax.ShapeDtypeStruct((M, D), jnp.float32),
        grid=(M // tm,),
        in_specs=[ctx_spec, res_spec, w_spec, b_spec, b_spec, b_spec],
        out_specs=out_spec,
        compiler_params=_mk_params(("parallel",), est),
        cost_estimate=cost,
    )(ctx, residual, wf, bf, gamma, beta)


def multi_head_attention(query, key, value, params, num_heads):
    """Pallas implementation of MultiHeadAttention.forward (attn_mask=None, dropout=0)."""
    B, L, D = query.shape
    H = num_heads
    assert D % H == 0
    dph = D // H
    assert dph // H > 0, "quirky reference scale (dph // num_heads) ** -0.5 needs dph >= num_heads"

    residual = query

    # fused Q/K/V projections (one pallas_call, three bf16 outputs)
    qp, kp, vp = _qkv_proj(
        query.reshape(B * L, D), key.reshape(B * L, D), value.reshape(B * L, D),
        params["wq"], params["bq"], params["wk"], params["bk"],
        params["wv"], params["bv"],
    )

    # exact torch semantics: .view(batch_size * num_heads, -1, dim_per_head)
    # (plain row-major reshape, NOT a head transpose; free relabel in HBM)
    qh = qp.reshape(B * H, L, dph)
    kh = kp.reshape(B * H, L, dph)
    vh = vp.reshape(B * H, L, dph)

    # quirky scale from the reference code: (key.size(-1) // num_heads) ** (-0.5)
    scale = float(dph // H) ** (-0.5)

    ctx, attention = _attention(qh, kh, vh, scale, H)

    # context.view(batch_size, -1, dim_per_head * num_heads) -> flat rows for matmul
    ctx2 = ctx.reshape(B * L, H * dph)

    out = _final(
        ctx2,
        residual.reshape(B * L, D),
        params["wf"], params["bf"], params["ln_gamma"], params["ln_beta"],
    ).reshape(B, L, D)

    return out, attention  # attention: [B*H, L, L], as in the torch module


# ------------------------------ reference ---------------------------------- #

def _reference(query, key, value, params, num_heads):
    B, L, D = query.shape
    H = num_heads
    dph = D // H
    residual = query
    qp = query.reshape(B * L, D) @ params["wq"] + params["bq"][0]
    kp = key.reshape(B * L, D) @ params["wk"] + params["bk"][0]
    vp = value.reshape(B * L, D) @ params["wv"] + params["bv"][0]
    qh = qp.reshape(B * H, L, dph)
    kh = kp.reshape(B * H, L, dph)
    vh = vp.reshape(B * H, L, dph)
    scale = float(dph // H) ** (-0.5)
    scores = jnp.einsum("bqd,bkd->bqk", qh, kh) * scale
    attn = jax.nn.softmax(scores, axis=-1)
    ctx = jnp.einsum("bqk,bkd->bqd", attn, vh).reshape(B * L, H * dph)
    out = ctx @ params["wf"] + params["bf"][0]
    y = residual.reshape(B * L, D) + out
    mean = jnp.mean(y, axis=-1, keepdims=True)
    var = jnp.mean((y - mean) ** 2, axis=-1, keepdims=True)
    y = (y - mean) * jax.lax.rsqrt(var + 1e-5) * params["ln_gamma"][0] + params["ln_beta"][0]
    return y.reshape(B, L, D), attn


# -------------------------------- main -------------------------------------- #

if __name__ == "__main__":
    B, L, MODEL_DIM, NUM_HEADS = 2, 8, 64, 4

    key = jax.random.PRNGKey(0)
    ks = jax.random.split(key, 12)
    init = lambda k, shape, s=0.05: (s * jax.random.normal(k, shape)).astype(jnp.float32)

    params = {
        "wq": init(ks[0], (MODEL_DIM, MODEL_DIM)),
        "bq": init(ks[1], (1, MODEL_DIM)),
        "wk": init(ks[2], (MODEL_DIM, MODEL_DIM)),
        "bk": init(ks[3], (1, MODEL_DIM)),
        "wv": init(ks[4], (MODEL_DIM, MODEL_DIM)),
        "bv": init(ks[5], (1, MODEL_DIM)),
        "wf": init(ks[6], (MODEL_DIM, MODEL_DIM)),
        "bf": init(ks[7], (1, MODEL_DIM)),
        "ln_gamma": jnp.ones((1, MODEL_DIM), jnp.float32),
        "ln_beta": jnp.zeros((1, MODEL_DIM), jnp.float32),
    }

    query = jax.random.normal(ks[8], (B, L, MODEL_DIM), jnp.float32)
    k_in = jax.random.normal(ks[9], (B, L, MODEL_DIM), jnp.float32)
    v_in = jax.random.normal(ks[10], (B, L, MODEL_DIM), jnp.float32)

    out, attn = multi_head_attention(query, k_in, v_in, params, NUM_HEADS)
    jax.block_until_ready((out, attn))

    ref_out, ref_attn = _reference(query, k_in, v_in, params, NUM_HEADS)
    assert out.shape == (B, L, MODEL_DIM)
    assert attn.shape == (B * NUM_HEADS, L, L)
    # bf16 MXU inputs (f32 accumulation) -> loosened tolerances vs the f32 reference
    assert jnp.allclose(out, ref_out, atol=3e-2, rtol=3e-2)
    assert jnp.allclose(attn, ref_attn, atol=2e-2, rtol=2e-2)

    print("KERNEL_OK")
</pallas_src>

<mosaic_0001>
module attributes {stable_mosaic.version = 11 : i64} {
  func.func @_qkv_proj_kernel(%arg0: i32, %arg1: memref<16x64xf32, #tpu.memory_space<vmem>>, %arg2: memref<16x64xf32, #tpu.memory_space<vmem>>, %arg3: memref<16x64xf32, #tpu.memory_space<vmem>>, %arg4: memref<64x64xf32, #tpu.memory_space<vmem>>, %arg5: memref<1x64xf32, #tpu.memory_space<vmem>>, %arg6: memref<64x64xf32, #tpu.memory_space<vmem>>, %arg7: memref<1x64xf32, #tpu.memory_space<vmem>>, %arg8: memref<64x64xf32, #tpu.memory_space<vmem>>, %arg9: memref<1x64xf32, #tpu.memory_space<vmem>>, %arg10: memref<16x64xbf16, #tpu.memory_space<vmem>>, %arg11: memref<16x64xbf16, #tpu.memory_space<vmem>>, %arg12: memref<16x64xbf16, #tpu.memory_space<vmem>>) attributes {dimension_semantics = [#tpu.dimension_semantics<parallel>], iteration_bounds = array<i64: 1>, scalar_prefetch = 0 : i64, scratch_operands = 0 : i64, tpu.core_type = #tpu.core_type<tc>, window_params = [{transform_indices = @transform_0, window_bounds = array<i64: 16, 64>}, {transform_indices = @transform_1, window_bounds = array<i64: 16, 64>}, {transform_indices = @transform_2, window_bounds = array<i64: 16, 64>}, {pipeline_mode = #tpu.pipeline_mode<synchronous>, transform_indices = @transform_3, window_bounds = array<i64: 64, 64>}, {pipeline_mode = #tpu.pipeline_mode<synchronous>, transform_indices = @transform_4, window_bounds = array<i64: 1, 64>}, {pipeline_mode = #tpu.pipeline_mode<synchronous>, transform_indices = @transform_5, window_bounds = array<i64: 64, 64>}, {pipeline_mode = #tpu.pipeline_mode<synchronous>, transform_indices = @transform_6, window_bounds = array<i64: 1, 64>}, {pipeline_mode = #tpu.pipeline_mode<synchronous>, transform_indices = @transform_7, window_bounds = array<i64: 64, 64>}, {pipeline_mode = #tpu.pipeline_mode<synchronous>, transform_indices = @transform_8, window_bounds = array<i64: 1, 64>}, {transform_indices = @transform_9, window_bounds = array<i64: 16, 64>}, {transform_indices = @transform_10, window_bounds = array<i64: 16, 64>}, {transform_indices = @transform_11, window_bounds = array<i64: 16, 64>}]} {
    %c0 = arith.constant 0 : index
    %c0_0 = arith.constant 0 : index
    %0 = vector.load %arg1[%c0, %c0_0] : memref<16x64xf32, #tpu.memory_space<vmem>>, vector<16x64xf32>
    %1 = arith.truncf %0 : vector<16x64xf32> to vector<16x64xbf16>
    %c0_1 = arith.constant 0 : index
    %c0_2 = arith.constant 0 : index
    %2 = vector.load %arg4[%c0_1, %c0_2] : memref<64x64xf32, #tpu.memory_space<vmem>>, vector<64x64xf32>
    %3 = arith.truncf %2 : vector<64x64xf32> to vector<64x64xbf16>
    %cst = arith.constant dense<0.000000e+00> : vector<16x64xf32>
    %4 = tpu.matmul %1, %3, %cst {dimension_numbers = #tpu.dot_dimension_numbers<[1], [0], [0], [1], [0, 0, 1, 1], [], []>} : vector<16x64xbf16>, vector<64x64xbf16>, vector<16x64xf32> -> vector<16x64xf32>
    %c0_3 = arith.constant 0 : index
    %c0_4 = arith.constant 0 : index
    %5 = vector.load %arg5[%c0_3, %c0_4] : memref<1x64xf32, #tpu.memory_space<vmem>>, vector<1x64xf32>
    %6 = vector.broadcast %5 : vector<1x64xf32> to vector<16x64xf32>
    %7 = arith.addf %4, %6 : vector<16x64xf32>
    %8 = arith.truncf %7 : vector<16x64xf32> to vector<16x64xbf16>
    %c0_5 = arith.constant 0 : index
    %c0_6 = arith.constant 0 : index
    %9 = vector.load %arg10[%c0_5, %c0_6] : memref<16x64xbf16, #tpu.memory_space<vmem>>, vector<16x64xbf16>
    tpu.vector_store %arg10[%c0_5, %c0_6], %8 {strides = array<i32>} : memref<16x64xbf16, #tpu.memory_space<vmem>>, vector<16x64xbf16>,
    %c0_7 = arith.constant 0 : index
    %c0_8 = arith.constant 0 : index
    %10 = vector.load %arg2[%c0_7, %c0_8] : memref<16x64xf32, #tpu.memory_space<vmem>>, vector<16x64xf32>
    %11 = arith.truncf %10 : vector<16x64xf32> to vector<16x64xbf16>
    %c0_9 = arith.constant 0 : index
    %c0_10 = arith.constant 0 : index
    %12 = vector.load %arg6[%c0_9, %c0_10] : memref<64x64xf32, #tpu.memory_space<vmem>>, vector<64x64xf32>
    %13 = arith.truncf %12 : vector<64x64xf32> to vector<64x64xbf16>
    %cst_11 = arith.constant dense<0.000000e+00> : vector<16x64xf32>
    %14 = tpu.matmul %11, %13, %cst_11 {dimension_numbers = #tpu.dot_dimension_numbers<[1], [0], [0], [1], [0, 0, 1, 1], [], []>} : vector<16x64xbf16>, vector<64x64xbf16>, vector<16x64xf32> -> vector<16x64xf32>
    %c0_12 = arith.constant 0 : index
    %c0_13 = arith.constant 0 : index
    %15 = vector.load %arg7[%c0_12, %c0_13] : memref<1x64xf32, #tpu.memory_space<vmem>>, vector<1x64xf32>
    %16 = vector.broadcast %15 : vector<1x64xf32> to vector<16x64xf32>
    %17 = arith.addf %14, %16 : vector<16x64xf32>
    %18 = arith.truncf %17 : vector<16x64xf32> to vector<16x64xbf16>
    %c0_14 = arith.constant 0 : index
    %c0_15 = arith.constant 0 : index
    %19 = vector.load %arg11[%c0_14, %c0_15] : memref<16x64xbf16, #tpu.memory_space<vmem>>, vector<16x64xbf16>
    tpu.vector_store %arg11[%c0_14, %c0_15], %18 {strides = array<i32>} : memref<16x64xbf16, #tpu.memory_space<vmem>>, vector<16x64xbf16>,
    %c0_16 = arith.constant 0 : index
    %c0_17 = arith.constant 0 : index
    %20 = vector.load %arg3[%c0_16, %c0_17] : memref<16x64xf32, #tpu.memory_space<vmem>>, vector<16x64xf32>
    %21 = arith.truncf %20 : vector<16x64xf32> to vector<16x64xbf16>
    %c0_18 = arith.constant 0 : index
    %c0_19 = arith.constant 0 : index
    %22 = vector.load %arg8[%c0_18, %c0_19] : memref<64x64xf32, #tpu.memory_space<vmem>>, vector<64x64xf32>
    %23 = arith.truncf %22 : vector<64x64xf32> to vector<64x64xbf16>
    %cst_20 = arith.constant dense<0.000000e+00> : vector<16x64xf32>
    %24 = tpu.matmul %21, %23, %cst_20 {dimension_numbers = #tpu.dot_dimension_numbers<[1], [0], [0], [1], [0, 0, 1, 1], [], []>} : vector<16x64xbf16>, vector<64x64xbf16>, vector<16x64xf32> -> vector<16x64xf32>
    %c0_21 = arith.constant 0 : index
    %c0_22 = arith.constant 0 : index
    %25 = vector.load %arg9[%c0_21, %c0_22] : memref<1x64xf32, #tpu.memory_space<vmem>>, vector<1x64xf32>
    %26 = vector.broadcast %25 : vector<1x64xf32> to vector<16x64xf32>
    %27 = arith.addf %24, %26 : vector<16x64xf32>
    %28 = arith.truncf %27 : vector<16x64xf32> to vector<16x64xbf16>
    %c0_23 = arith.constant 0 : index
    %c0_24 = arith.constant 0 : index
    %29 = vector.load %arg12[%c0_23, %c0_24] : memref<16x64xbf16, #tpu.memory_space<vmem>>, vector<16x64xbf16>
    tpu.vector_store %arg12[%c0_23, %c0_24], %28 {strides = array<i32>} : memref<16x64xbf16, #tpu.memory_space<vmem>>, vector<16x64xbf16>,
    return
  }
  func.func @transform_0(%arg0: i32) -> (i32, i32) {
    %c0_i32 = arith.constant 0 : i32
    %c0_i32_0 = arith.constant 0 : i32
    return %arg0, %c0_i32 : i32, i32
  }
  func.func @transform_1(%arg0: i32) -> (i32, i32) {
    %c0_i32 = arith.constant 0 : i32
    %c0_i32_0 = arith.constant 0 : i32
    return %arg0, %c0_i32 : i32, i32
  }
  func.func @transform_2(%arg0: i32) -> (i32, i32) {
    %c0_i32 = arith.constant 0 : i32
    %c0_i32_0 = arith.constant 0 : i32
    return %arg0, %c0_i32 : i32, i32
  }
  func.func @transform_3(%arg0: i32) -> (i32, i32) {
    %c0_i32 = arith.constant 0 : i32
    %c0_i32_0 = arith.constant 0 : i32
    %c0_i32_1 = arith.constant 0 : i32
    return %c0_i32, %c0_i32_0 : i32, i32
  }
  func.func @transform_4(%arg0: i32) -> (i32, i32) {
    %c0_i32 = arith.constant 0 : i32
    %c0_i32_0 = arith.constant 0 : i32
    %c0_i32_1 = arith.constant 0 : i32
    return %c0_i32, %c0_i32_0 : i32, i32
  }
  func.func @transform_5(%arg0: i32) -> (i32, i32) {
    %c0_i32 = arith.constant 0 : i32
    %c0_i32_0 = arith.constant 0 : i32
    %c0_i32_1 = arith.constant 0 : i32
    return %c0_i32, %c0_i32_0 : i32, i32
  }
  func.func @transform_6(%arg0: i32) -> (i32, i32) {
    %c0_i32 = arith.constant 0 : i32
    %c0_i32_0 = arith.constant 0 : i32
    %c0_i32_1 = arith.constant 0 : i32
    return %c0_i32, %c0_i32_0 : i32, i32
  }
  func.func @transform_7(%arg0: i32) -> (i32, i32) {
    %c0_i32 = arith.constant 0 : i32
    %c0_i32_0 = arith.constant 0 : i32
    %c0_i32_1 = arith.constant 0 : i32
    return %c0_i32, %c0_i32_0 : i32, i32
  }
  func.func @transform_8(%arg0: i32) -> (i32, i32) {
    %c0_i32 = arith.constant 0 : i32
    %c0_i32_0 = arith.constant 0 : i32
    %c0_i32_1 = arith.constant 0 : i32
    return %c0_i32, %c0_i32_0 : i32, i32
  }
  func.func @transform_9(%arg0: i32) -> (i32, i32) {
    %c0_i32 = arith.constant 0 : i32
    %c0_i32_0 = arith.constant 0 : i32
    return %arg0, %c0_i32 : i32, i32
  }
  func.func @transform_10(%arg0: i32) -> (i32, i32) {
    %c0_i32 = arith.constant 0 : i32
    %c0_i32_0 = arith.constant 0 : i32
    return %arg0, %c0_i32 : i32, i32
  }
  func.func @transform_11(%arg0: i32) -> (i32, i32) {
    %c0_i32 = arith.constant 0 : i32
    %c0_i32_0 = arith.constant 0 : i32
    return %arg0, %c0_i32 : i32, i32
  }
}

</mosaic_0001>

<llo_original>
// kernel: tpu_custom_call.1
$region0: #{tpu_custom_call.1}
  #allocation0 [shape = 'u32[]', space=smem, size = 0x4, offset = 0x4, fixed_abs, tag = 'smem constant byte address 0x4 - core index']
  #allocation1 [shape = 'u32[144,128]{1,0:T(1,128)}', space=vmem, size = 0x12000, scoped, tag = 'internal scratch']
  %s0 = inlined_call_operand.hbm [shape: f32[16,64], index: 0, kind: input, shape index: {}]
  %s1 = inlined_call_operand.hbm [shape: f32[16,64], index: 1, kind: input, shape index: {}]
  %s2 = inlined_call_operand.hbm [shape: f32[16,64], index: 2, kind: input, shape index: {}]
  %s3 = inlined_call_operand.hbm [shape: f32[64,64], index: 3, kind: input, shape index: {}]
  %s4 = inlined_call_operand.vmem [shape: f32[1,64], index: 4, kind: input, shape index: {}]
  %s5 = inlined_call_operand.hbm [shape: f32[64,64], index: 5, kind: input, shape index: {}]
  %s6 = inlined_call_operand.vmem [shape: f32[1,64], index: 6, kind: input, shape index: {}]
  %s7 = inlined_call_operand.hbm [shape: f32[64,64], index: 7, kind: input, shape index: {}]
  %s8 = inlined_call_operand.vmem [shape: f32[1,64], index: 8, kind: input, shape index: {}]
  %s9 = inlined_call_operand.hbm [shape: bf16[16,64], index: 9, kind: output, shape index: {0}]
  %s10 = inlined_call_operand.hbm [shape: bf16[16,64], index: 10, kind: output, shape index: {1}]
  %s11 = inlined_call_operand.hbm [shape: bf16[16,64], index: 11, kind: output, shape index: {2}]
  %12 = xla_tuple %s9, %s10, %s11
  %s13 = sld [smem:[#allocation0]]
  $region86: #{tpu_custom_call.1} parent=0
    _
  %s15 = ssub.s32 1, %s13
  %s16 = scalar_select 0, %s15, %s13
  $region1: #{tpu_custom_call.1} parent=0
    #allocation2 [shape = 'u8[8192]{0}', space=vmem, size = 0x2000, scoped, tag = 'input window, operand 0, single buffered']
    #allocation3 [shape = 's32[1]{0}', space=sflag, size = 0x4, scoped, tag = 'scoped memory for tpu_custom_call.1']
    #allocation4 [shape = 's32[1]{0}', space=sflag, size = 0x4, scoped, tag = 'scoped memory for tpu_custom_call.1']
    #allocation5 [shape = 'u8[8192]{0}', space=vmem, size = 0x2000, scoped, tag = 'input window, operand 1, single buffered']
    #allocation6 [shape = 's32[1]{0}', space=sflag, size = 0x4, scoped, tag = 'scoped memory for tpu_custom_call.1']
    #allocation7 [shape = 'u8[8192]{0}', space=vmem, size = 0x2000, scoped, tag = 'input window, operand 2, single buffered']
    #allocation8 [shape = 'u8[32768]{0}', space=vmem, size = 0x8000, scoped, tag = 'input window, operand 3, single buffered']
    #allocation9 [shape = 's32[1]{0}', space=sflag, size = 0x4, scoped, tag = 'scoped memory for tpu_custom_call.1']
    #allocation10 [shape = 'u8[32768]{0}', space=vmem, size = 0x8000, scoped, tag = 'input window, operand 5, single buffered']
    #allocation11 [shape = 'u8[32768]{0}', space=vmem, size = 0x8000, scoped, tag = 'input window, operand 7, single buffered']
    #allocation12 [shape = 's32[1]{0}', space=sflag, size = 0x4, scoped, tag = 'scoped memory for tpu_custom_call.1']
    #allocation13 [shape = 'u8[4096]{0}', space=vmem, size = 0x1000, scoped, tag = 'output window, operand 0, single buffered']
    #allocation14 [shape = 'u8[4096]{0}', space=vmem, size = 0x1000, scoped, tag = 'output window, operand 1, single buffered']
    #allocation15 [shape = 's32[1]{0}', space=sflag, size = 0x4, scoped, tag = 'scoped memory for tpu_custom_call.1']
    #allocation16 [shape = 'u8[4096]{0}', space=vmem, size = 0x1000, scoped, tag = 'output window, operand 2, single buffered']
    %17 = vsyncpa [#allocation3], 0
    %18 = vsyncpa [#allocation6], 0
    %19 = vsyncpa [#allocation9], 0
    %20 = vsyncpa [#allocation12], 0
    %21 = vsyncpa [#allocation4], 0
    %22 = vsyncpa [#allocation15], 0
    // Predicated region
    $region2: #{tpu_custom_call.1} parent=1 // pred_check
      _
    $region3: #{tpu_custom_call.1} parent=1 // pred_check_branch
      %24 = sbr.rel (0) target = $region5
    $region4: #{tpu_custom_call.1} parent=1 // pred_region
      %s26 = ssub.s32 256, 256
      %27 = vsyncadd [#allocation3], %s26
      %s28 = sshll.u32 [#allocation2], 4
      %s29 = int_to_ptr.vmem [resolvable:$true] %s28
      %34 = dma.hbm_to_vmem [thread:$0]  %s0, 256, %s29, [#allocation3], 128, 128, 8
    $region5: #{tpu_custom_call.1} parent=1 // pred_fallthru
      _
    // Predicated region
    $region6: #{tpu_custom_call.1} parent=1 // pred_check
      _
    $region7: #{tpu_custom_call.1} parent=1 // pred_check_branch
      %36 = sbr.rel (0) target = $region9
    $region8: #{tpu_custom_call.1} parent=1 // pred_region
      %s38 = ssub.s32 256, 256
      %39 = vsyncadd [#allocation6], %s38
      %s40 = sshll.u32 [#allocation5], 4
      %s41 = int_to_ptr.vmem [resolvable:$true] %s40
      %46 = dma.hbm_to_vmem [thread:$0]  %s1, 256, %s41, [#allocation6], 128, 128, 8
    $region9: #{tpu_custom_call.1} parent=1 // pred_fallthru
      _
    // Predicated region
    $region10: #{tpu_custom_call.1} parent=1 // pred_check
      _
    $region11: #{tpu_custom_call.1} parent=1 // pred_check_branch
      %48 = sbr.rel (0) target = $region13
    $region12: #{tpu_custom_call.1} parent=1 // pred_region
      %s50 = ssub.s32 256, 256
      %51 = vsyncadd [#allocation6], %s50
      %s52 = sshll.u32 [#allocation7], 4
      %s53 = int_to_ptr.vmem [resolvable:$true] %s52
      %58 = dma.hbm_to_vmem [thread:$0]  %s2, 256, %s53, [#allocation6], 128, 128, 8
    $region13: #{tpu_custom_call.1} parent=1 // pred_fallthru
      _
    // Predicated region
    $region14: #{tpu_custom_call.1} parent=1 // pred_check
      _
    $region15: #{tpu_custom_call.1} parent=1 // pred_check_branch
      %60 = sbr.rel (0) target = $region17
    $region16: #{tpu_custom_call.1} parent=1 // pred_region
      %s62 = ssub.s32 1024, 1024
      %63 = vsyncadd [#allocation9], %s62
      %s64 = sshll.u32 [#allocation8], 4
      %s65 = int_to_ptr.vmem [resolvable:$true] %s64
      %70 = dma.hbm_to_vmem [thread:$0]  %s3, 1024, %s65, [#allocation9], 128, 128, 8
    $region17: #{tpu_custom_call.1} parent=1 // pred_fallthru
      _
    // Predicated region
    $region18: #{tpu_custom_call.1} parent=1 // pred_check
      _
    $region19: #{tpu_custom_call.1} parent=1 // pred_check_branch
      %72 = sbr.rel (0) target = $region21
    $region20: #{tpu_custom_call.1} parent=1 // pred_region
      _
    $region21: #{tpu_custom_call.1} parent=1 // pred_fallthru
      _
    // Predicated region
    $region22: #{tpu_custom_call.1} parent=1 // pred_check
      _
    $region23: #{tpu_custom_call.1} parent=1 // pred_check_branch
      %74 = sbr.rel (0) target = $region25
    $region24: #{tpu_custom_call.1} parent=1 // pred_region
      %s76 = ssub.s32 1024, 1024
      %77 = vsyncadd [#allocation9], %s76
      %s78 = sshll.u32 [#allocation10], 4
      %s79 = int_to_ptr.vmem [resolvable:$true] %s78
      %84 = dma.hbm_to_vmem [thread:$0]  %s5, 1024, %s79, [#allocation9], 128, 128, 8
    $region25: #{tpu_custom_call.1} parent=1 // pred_fallthru
      _
    // Predicated region
    $region26: #{tpu_custom_call.1} parent=1 // pred_check
      _
    $region27: #{tpu_custom_call.1} parent=1 // pred_check_branch
      %86 = sbr.rel (0) target = $region29
    $region28: #{tpu_custom_call.1} parent=1 // pred_region
      _
    $region29: #{tpu_custom_call.1} parent=1 // pred_fallthru
      _
    // Predicated region
    $region30: #{tpu_custom_call.1} parent=1 // pred_check
      _
    $region31: #{tpu_custom_call.1} parent=1 // pred_check_branch
      %88 = sbr.rel (0) target = $region33
    $region32: #{tpu_custom_call.1} parent=1 // pred_region
      %s90 = ssub.s32 1024, 1024
      %91 = vsyncadd [#allocation12], %s90
      %s92 = sshll.u32 [#allocation11], 4
      %s93 = int_to_ptr.vmem [resolvable:$true] %s92
      %98 = dma.hbm_to_vmem [thread:$0]  %s7, 1024, %s93, [#allocation12], 128, 128, 8
    $region33: #{tpu_custom_call.1} parent=1 // pred_fallthru
      _
    // Predicated region
    $region34: #{tpu_custom_call.1} parent=1 // pred_check
      _
    $region35: #{tpu_custom_call.1} parent=1 // pred_check_branch
      %100 = sbr.rel (0) target = $region37
    $region36: #{tpu_custom_call.1} parent=1 // pred_region
      _
    $region37: #{tpu_custom_call.1} parent=1 // pred_fallthru
      _
    // Predicated region
    $region38: #{tpu_custom_call.1} parent=1 // pred_check
      _
    $region39: #{tpu_custom_call.1} parent=1 // pred_check_branch
      %102 = sbr.rel (0) target = $region41
    $region40: #{tpu_custom_call.1} parent=1 // pred_region
      %103 = dma.done [#allocation3], 256
    $region41: #{tpu_custom_call.1} parent=1 // pred_fallthru
      _
    // Predicated region
    $region42: #{tpu_custom_call.1} parent=1 // pred_check
      _
    $region43: #{tpu_custom_call.1} parent=1 // pred_check_branch
      %105 = sbr.rel (0) target = $region45
    $region44: #{tpu_custom_call.1} parent=1 // pred_region
      %106 = dma.done [#allocation6], 256
    $region45: #{tpu_custom_call.1} parent=1 // pred_fallthru
      _
    // Predicated region
    $region46: #{tpu_custom_call.1} parent=1 // pred_check
      _
    $region47: #{tpu_custom_call.1} parent=1 // pred_check_branch
      %108 = sbr.rel (0) target = $region49
    $region48: #{tpu_custom_call.1} parent=1 // pred_region
      %109 = dma.done [#allocation6], 256
    $region49: #{tpu_custom_call.1} parent=1 // pred_fallthru
      _
    // Predicated region
    $region50: #{tpu_custom_call.1} parent=1 // pred_check
      _
    $region51: #{tpu_custom_call.1} parent=1 // pred_check_branch
      %111 = sbr.rel (0) target = $region53
    $region52: #{tpu_custom_call.1} parent=1 // pred_region
      %112 = dma.done [#allocation9], 1024
    $region53: #{tpu_custom_call.1} parent=1 // pred_fallthru
      _
    // Predicated region
    $region54: #{tpu_custom_call.1} parent=1 // pred_check
      _
    $region55: #{tpu_custom_call.1} parent=1 // pred_check_branch
      %114 = sbr.rel (0) target = $region57
    $region56: #{tpu_custom_call.1} parent=1 // pred_region
      %115 = dma.done [#allocation9], 1024
    $region57: #{tpu_custom_call.1} parent=1 // pred_fallthru
      _
    // Predicated region
    $region58: #{tpu_custom_call.1} parent=1 // pred_check
      _
    $region59: #{tpu_custom_call.1} parent=1 // pred_check_branch
      %117 = sbr.rel (0) target = $region61
    $region60: #{tpu_custom_call.1} parent=1 // pred_region
      %118 = dma.done [#allocation12], 1024
    $region61: #{tpu_custom_call.1} parent=1 // pred_fallthru
      _
    %v120 = vld [vmem:[#allocation2] sm:$0xff]
    %v121 = vld [vmem:[#allocation2 + $0x8] sm:$0xff]
    %v122 = vpack.c.bf16 %v121, %v120
    %v123 = vld [vmem:[#allocation8] sm:$0xff]
    %v124 = vld [vmem:[#allocation8 + $0x8] sm:$0xff]
    %v125 = vld [vmem:[#allocation8 + $0x10] sm:$0xff]
    %v126 = vld [vmem:[#allocation8 + $0x18] sm:$0xff]
    %v127 = vld [vmem:[#allocation8 + $0x20] sm:$0xff]
    %v128 = vld [vmem:[#allocation8 + $0x28] sm:$0xff]
    %v129 = vld [vmem:[#allocation8 + $0x30] sm:$0xff]
    %v130 = vld [vmem:[#allocation8 + $0x38] sm:$0xff]
    %v131 = vpack.c.bf16 %v124, %v123
    %v132 = vpack.c.bf16 %v126, %v125
    %v133 = vpack.c.bf16 %v128, %v127
    %v134 = vpack.c.bf16 %v130, %v129
    %v135 = vld [vmem:[%s4] sm:$0x1]
    %v137 = vlaneseq
    %v138 = vshrl.u32 %v137, 7
    %v139 = vsub.s32 0, %v138
    %v140 = vrot.slane %v135, %v139
    %vm142 = vcmask 523264
    %v144 = vsel %vm142, %v122, 0
    %146 = vmatprep.subr.bf16.mxu0 0
    %147 = vmatpush1.bf16.msra.mxu0 %v131
    %148 = vmatprep.subr.bf16.mxu0 0
    %149 = vmatpush1.bf16.msra.mxu0 %v132
    %150 = vmatprep.subr.bf16.mxu0 0
    %151 = vmatpush1.bf16.msra.mxu0 %v133
    %152 = vmatprep.subr.bf16.mxu0 0
    %153 = vmatpush1.bf16.msra.mxu0 %v134
    %154 = vmatprep.subr.bf16.mxu0 0
    %155 = vmatpush1.bf16.msra.mxu0 0
    %156 = vmatprep.subr.bf16.mxu0 0
    %157 = vmatpush1.bf16.msra.mxu0 0
    %158 = vmatprep.subr.bf16.mxu0 0
    %159 = vmatpush1.bf16.msra.mxu0 0
    %160 = vmatprep.subr.bf16.mxu0 0
    %161 = vmatpush1.bf16.msra.mxu0 0
    %162 = vmatprep.subr.bf16.mxu0 0
    %163 = vmatpush1.bf16.msra.mxu0 0
    %164 = vmatprep.subr.bf16.mxu0 0
    %165 = vmatpush1.bf16.msra.mxu0 0
    %166 = vmatprep.subr.bf16.mxu0 0
    %167 = vmatpush1.bf16.msra.mxu0 0
    %168 = vmatprep.subr.bf16.mxu0 0
    %169 = vmatpush1.bf16.msra.mxu0 0
    %170 = vmatprep.subr.bf16.mxu0 0
    %171 = vmatpush1.bf16.msra.mxu0 0
    %172 = vmatprep.subr.bf16.mxu0 0
    %173 = vmatpush1.bf16.msra.mxu0 0
    %174 = vmatprep.subr.bf16.mxu0 0
    %175 = vmatpush1.bf16.msra.mxu0 0
    %176 = vmatprep.subr.bf16.mxu0 0
    %177 = vmatpush1.bf16.msra.mxu0 0
    %178 = vmatprep.mubr.bf16.mxu0 0
    %179 = vmatmul.mubr.bf16.gmra.mrb[0].mxu0 %v144
    %v180 = vpop.f32.mrb[0].mxu0
    %v181 = vadd.f32 %v140, %v180
    %v182 = vpop.f32.mrb[0].mxu0
    %v183 = vpop.f32.mrb[0].mxu0
    %v184 = vadd.f32 %v140, %v183
    %v185 = vpop.f32.mrb[0].mxu0
    %186 = vdwg.mxu0
    %v187 = vpack.c.bf16 %v184, %v181
    %v189 = vunpack.c.l.b16 %v187
    %v190 = vunpack.c.h.b16 %v187
    %v191 = vpack.c.b16 %v189, %v189
    %v192 = vpack.c.b16 %v190, %v190
    %vm195 = vcmask 519168
    %196 = vst.msk [vmem:[#allocation13] sm:$0xf] %vm195, %v191
    %197 = vst.msk [vmem:[#allocation13 + $0x4] sm:$0xf] %vm195, %v192
    %v198 = vld [vmem:[#allocation5] sm:$0xff]
    %v199 = vld [vmem:[#allocation5 + $0x8] sm:$0xff]
    %v200 = vpack.c.bf16 %v199, %v198
    %v201 = vld [vmem:[#allocation10] sm:$0xff]
    %v202 = vld [vmem:[#allocation10 + $0x8] sm:$0xff]
    %v203 = vld [vmem:[#allocation10 + $0x10] sm:$0xff]
    %v204 = vld [vmem:[#allocation10 + $0x18] sm:$0xff]
    %v205 = vld [vmem:[#allocation10 + $0x20] sm:$0xff]
    %v206 = vld [vmem:[#allocation10 + $0x28] sm:$0xff]
    %v207 = vld [vmem:[#allocation10 + $0x30] sm:$0xff]
    %v208 = vld [vmem:[#allocation10 + $0x38] sm:$0xff]
    %v209 = vpack.c.bf16 %v202, %v201
    %v210 = vpack.c.bf16 %v204, %v203
    %v211 = vpack.c.bf16 %v206, %v205
    %v212 = vpack.c.bf16 %v208, %v207
    %v213 = vld [vmem:[%s6] sm:$0x1]
    %v215 = vlaneseq
    %v216 = vshrl.u32 %v215, 7
    %v217 = vsub.s32 0, %v216
    %v218 = vrot.slane %v213, %v217
    %v221 = vsel %vm142, %v200, 0
    %223 = vmatprep.subr.bf16.mxu0 0
    %224 = vmatpush1.bf16.msra.mxu0 %v209
    %225 = vmatprep.subr.bf16.mxu0 0
    %226 = vmatpush1.bf16.msra.mxu0 %v210
    %227 = vmatprep.subr.bf16.mxu0 0
    %228 = vmatpush1.bf16.msra.mxu0 %v211
    %229 = vmatprep.subr.bf16.mxu0 0
    %230 = vmatpush1.bf16.msra.mxu0 %v212
    %231 = vmatprep.subr.bf16.mxu0 0
    %232 = vmatpush1.bf16.msra.mxu0 0
    %233 = vmatprep.subr.bf16.mxu0 0
    %234 = vmatpush1.bf16.msra.mxu0 0
    %235 = vmatprep.subr.bf16.mxu0 0
    %236 = vmatpush1.bf16.msra.mxu0 0
    %237 = vmatprep.subr.bf16.mxu0 0
    %238 = vmatpush1.bf16.msra.mxu0 0
    %239 = vmatprep.subr.bf16.mxu0 0
    %240 = vmatpush1.bf16.msra.mxu0 0
    %241 = vmatprep.subr.bf16.mxu0 0
    %242 = vmatpush1.bf16.msra.mxu0 0
    %243 = vmatprep.subr.bf16.mxu0 0
    %244 = vmatpush1.bf16.msra.mxu0 0
    %245 = vmatprep.subr.bf16.mxu0 0
    %246 = vmatpush1.bf16.msra.mxu0 0
    %247 = vmatprep.subr.bf16.mxu0 0
    %248 = vmatpush1.bf16.msra.mxu0 0
    %249 = vmatprep.subr.bf16.mxu0 0
    %250 = vmatpush1.bf16.msra.mxu0 0
    %251 = vmatprep.subr.bf16.mxu0 0
    %252 = vmatpush1.bf16.msra.mxu0 0
    %253 = vmatprep.subr.bf16.mxu0 0
    %254 = vmatpush1.bf16.msra.mxu0 0
    %255 = vmatprep.mubr.bf16.mxu0 0
    %256 = vmatmul.mubr.bf16.gmra.mrb[0].mxu0 %v221
    %v257 = vpop.f32.mrb[0].mxu0
    %v258 = vadd.f32 %v218, %v257
    %v259 = vpop.f32.mrb[0].mxu0
    %v260 = vpop.f32.mrb[0].mxu0
    %v261 = vadd.f32 %v218, %v260
    %v262 = vpop.f32.mrb[0].mxu0
    %263 = vdwg.mxu0
    %v264 = vpack.c.bf16 %v261, %v258
    %v266 = vunpack.c.l.b16 %v264
    %v267 = vunpack.c.h.b16 %v264
    %v268 = vpack.c.b16 %v266, %v266
    %v269 = vpack.c.b16 %v267, %v267
    %272 = vst.msk [vmem:[#allocation14] sm:$0xf] %vm195, %v268
    %273 = vst.msk [vmem:[#allocation14 + $0x4] sm:$0xf] %vm195, %v269
    %v274 = vld [vmem:[#allocation7] sm:$0xff]
    %v275 = vld [vmem:[#allocation7 + $0x8] sm:$0xff]
    %v276 = vpack.c.bf16 %v275, %v274
    %v277 = vld [vmem:[#allocation11] sm:$0xff]
    %v278 = vld [vmem:[#allocation11 + $0x8] sm:$0xff]
    %v279 = vld [vmem:[#allocation11 + $0x10] sm:$0xff]
    %v280 = vld [vmem:[#allocation11 + $0x18] sm:$0xff]
    %v281 = vld [vmem:[#allocation11 + $0x20] sm:$0xff]
    %v282 = vld [vmem:[#allocation11 + $0x28] sm:$0xff]
    %v283 = vld [vmem:[#allocation11 + $0x30] sm:$0xff]
    %v284 = vld [vmem:[#allocation11 + $0x38] sm:$0xff]
    %v285 = vpack.c.bf16 %v278, %v277
    %v286 = vpack.c.bf16 %v280, %v279
    %v287 = vpack.c.bf16 %v282, %v281
    %v288 = vpack.c.bf16 %v284, %v283
    %v289 = vld [vmem:[%s8] sm:$0x1]
    %v291 = vlaneseq
    %v292 = vshrl.u32 %v291, 7
    %v293 = vsub.s32 0, %v292
    %v294 = vrot.slane %v289, %v293
    %v297 = vsel %vm142, %v276, 0
    %299 = vmatprep.subr.bf16.mxu0 0
    %300 = vmatpush1.bf16.msra.mxu0 %v285
    %301 = vmatprep.subr.bf16.mxu0 0
    %302 = vmatpush1.bf16.msra.mxu0 %v286
    %303 = vmatprep.subr.bf16.mxu0 0
    %304 = vmatpush1.bf16.msra.mxu0 %v287
    %305 = vmatprep.subr.bf16.mxu0 0
    %306 = vmatpush1.bf16.msra.mxu0 %v288
    %307 = vmatprep.subr.bf16.mxu0 0
    %308 = vmatpush1.bf16.msra.mxu0 0
    %309 = vmatprep.subr.bf16.mxu0 0
    %310 = vmatpush1.bf16.msra.mxu0 0
    %311 = vmatprep.subr.bf16.mxu0 0
    %312 = vmatpush1.bf16.msra.mxu0 0
    %313 = vmatprep.subr.bf16.mxu0 0
    %314 = vmatpush1.bf16.msra.mxu0 0
    %315 = vmatprep.subr.bf16.mxu0 0
    %316 = vmatpush1.bf16.msra.mxu0 0
    %317 = vmatprep.subr.bf16.mxu0 0
    %318 = vmatpush1.bf16.msra.mxu0 0
    %319 = vmatprep.subr.bf16.mxu0 0
    %320 = vmatpush1.bf16.msra.mxu0 0
    %321 = vmatprep.subr.bf16.mxu0 0
    %322 = vmatpush1.bf16.msra.mxu0 0
    %323 = vmatprep.subr.bf16.mxu0 0
    %324 = vmatpush1.bf16.msra.mxu0 0
    %325 = vmatprep.subr.bf16.mxu0 0
    %326 = vmatpush1.bf16.msra.mxu0 0
    %327 = vmatprep.subr.bf16.mxu0 0
    %328 = vmatpush1.bf16.msra.mxu0 0
    %329 = vmatprep.subr.bf16.mxu0 0
    %330 = vmatpush1.bf16.msra.mxu0 0
    %331 = vmatprep.mubr.bf16.mxu0 0
    %332 = vmatmul.mubr.bf16.gmra.mrb[0].mxu0 %v297
    %v333 = vpop.f32.mrb[0].mxu0
    %v334 = vadd.f32 %v294, %v333
    %v335 = vpop.f32.mrb[0].mxu0
    %v336 = vpop.f32.mrb[0].mxu0
    %v337 = vadd.f32 %v294, %v336
    %v338 = vpop.f32.mrb[0].mxu0
    %339 = vdwg.mxu0
    %v340 = vpack.c.bf16 %v337, %v334
    %v342 = vunpack.c.l.b16 %v340
    %v343 = vunpack.c.h.b16 %v340
    %v344 = vpack.c.b16 %v342, %v342
    %v345 = vpack.c.b16 %v343, %v343
    %348 = vst.msk [vmem:[#allocation16] sm:$0xf] %vm195, %v344
    %349 = vst.msk [vmem:[#allocation16 + $0x4] sm:$0xf] %vm195, %v345
    // Predicated region
    $region62: #{tpu_custom_call.1} parent=1 // pred_check
      _
    $region63: #{tpu_custom_call.1} parent=1 // pred_check_branch
      %351 = sbr.rel (0) target = $region65
    $region64: #{tpu_custom_call.1} parent=1 // pred_region
      %s353 = ssub.s32 128, 128
      %354 = vsyncadd [#allocation4], %s353
      %s355 = sshll.u32 [#allocation13], 4
      %s356 = int_to_ptr.vmem [resolvable:$true] %s355
      %361 = dma.vmem_to_hbm [thread:$0]  %s356, 128, %s9, [#allocation4], 64, 64, 4
    $region65: #{tpu_custom_call.1} parent=1 // pred_fallthru
      _
    // Predicated region
    $region66: #{tpu_custom_call.1} parent=1 // pred_check
      _
    $region67: #{tpu_custom_call.1} parent=1 // pred_check_branch
      %363 = sbr.rel (0) target = $region69
    $region68: #{tpu_custom_call.1} parent=1 // pred_region
      %s365 = ssub.s32 128, 128
      %366 = vsyncadd [#allocation15], %s365
      %s367 = sshll.u32 [#allocation14], 4
      %s368 = int_to_ptr.vmem [resolvable:$true] %s367
      %373 = dma.vmem_to_hbm [thread:$0]  %s368, 128, %s10, [#allocation15], 64, 64, 4
    $region69: #{tpu_custom_call.1} parent=1 // pred_fallthru
      _
    // Predicated region
    $region70: #{tpu_custom_call.1} parent=1 // pred_check
      _
    $region71: #{tpu_custom_call.1} parent=1 // pred_check_branch
      %375 = sbr.rel (0) target = $region73
    $region72: #{tpu_custom_call.1} parent=1 // pred_region
      %s377 = ssub.s32 128, 128
      %378 = vsyncadd [#allocation15], %s377
      %s379 = sshll.u32 [#allocation16], 4
      %s380 = int_to_ptr.vmem [resolvable:$true] %s379
      %385 = dma.vmem_to_hbm [thread:$0]  %s380, 128, %s11, [#allocation15], 64, 64, 4
    $region73: #{tpu_custom_call.1} parent=1 // pred_fallthru
      _
    // Predicated region
    $region74: #{tpu_custom_call.1} parent=1 // pred_check
      _
    $region75: #{tpu_custom_call.1} parent=1 // pred_check_branch
      %387 = sbr.rel (0) target = $region77
    $region76: #{tpu_custom_call.1} parent=1 // pred_region
      %388 = dma.done [#allocation4], 128
    $region77: #{tpu_custom_call.1} parent=1 // pred_fallthru
      _
    // Predicated region
    $region78: #{tpu_custom_call.1} parent=1 // pred_check
      _
    $region79: #{tpu_custom_call.1} parent=1 // pred_check_branch
      %390 = sbr.rel (0) target = $region81
    $region80: #{tpu_custom_call.1} parent=1 // pred_region
      %391 = dma.done [#allocation15], 128
    $region81: #{tpu_custom_call.1} parent=1 // pred_fallthru
      _
    // Predicated region
    $region82: #{tpu_custom_call.1} parent=1 // pred_check
      _
    $region83: #{tpu_custom_call.1} parent=1 // pred_check_branch
      %393 = sbr.rel (0) target = $region85
    $region84: #{tpu_custom_call.1} parent=1 // pred_region
      %394 = dma.done [#allocation15], 128
    $region85: #{tpu_custom_call.1} parent=1 // pred_fallthru
      _
    %395 = vsyncpa [#allocation3], 1
    %396 = vsyncpa [#allocation6], 1
    %397 = vsyncpa [#allocation9], 1
    %398 = vsyncpa [#allocation12], 1
    %399 = vsyncpa [#allocation4], 1
    %400 = vsyncpa [#allocation15], 1

</llo_original>
